<compile_context>
chip_gen: v7x
topology: tpu7x:2x2x1
jax: 0.10.0
libtpu: 0.0.40
codegen_flags: <defaults>
</compile_context>

<pallas_src>
import jax
import jax.numpy as jnp
from jax.experimental import pallas as pl
from jax.experimental.pallas import tpu as pltpu


def _blur_kernel(x_ref, o_ref, pad_ref):
    """x_ref/o_ref: (B, H, W) tiles; pad_ref: (B, H+2, W+2) f32 VMEM scratch."""
    b, h, w = o_ref.shape
    hp2, wp2 = h + 2, w + 2

    # Zero only the 1-pixel halo of the scratch; the interior is fully
    # overwritten below, so no full-buffer clear is needed.
    zrow = jnp.zeros((b, 1, wp2), jnp.float32)
    zcol = jnp.zeros((b, hp2, 1), jnp.float32)
    pad_ref[:, 0:1, :] = zrow
    pad_ref[:, h + 1:hp2, :] = zrow
    pad_ref[:, :, 0:1] = zcol
    pad_ref[:, :, w + 1:wp2] = zcol

    # Stage the tile into the interior of the padded scratch (VMEM->VMEM).
    pad_ref[:, 1:h + 1, 1:w + 1] = x_ref[...].astype(jnp.float32)

    xp = pad_ref[...]                                                  # (B, H+2, W+2)

    # Horizontal pass: [1, 2, 1] along W (static lane slices).
    t = xp[:, :, 0:w] + 2.0 * xp[:, :, 1:w + 1] + xp[:, :, 2:w + 2]    # (B, H+2, W)

    # Vertical pass: [1, 2, 1] along H (static sublane slices).
    out = t[:, 0:h, :] + 2.0 * t[:, 1:h + 1, :] + t[:, 2:h + 2, :]     # (B, H, W)

    o_ref[...] = (out * jnp.float32(1.0 / 16.0)).astype(o_ref.dtype)


def blur(x, *, vmem_budget_bytes=12 * 1024 * 1024):
    """x: (N, C, H, W).  Depthwise 3x3 binomial blur, same shape/dtype."""
    n, c, h, w = x.shape
    rows = n * c
    x2 = x.reshape(rows, h, w)

    itemsize = x.dtype.itemsize
    # Per-row VMEM footprint: double-buffered input + output tiles plus the
    # single-buffered padded f32 scratch.
    per_row = (2 * h * w * itemsize) + (2 * h * w * itemsize) + (h + 2) * (w + 2) * 4
    block_rows = max(1, min(rows, vmem_budget_bytes // max(1, per_row)))
    grid = (pl.cdiv(rows, block_rows),)

    out2 = pl.pallas_call(
        _blur_kernel,
        out_shape=jax.ShapeDtypeStruct((rows, h, w), x.dtype),
        grid=grid,
        in_specs=[
            # Full spatial extent per block (last two block dims equal the full
            # array dims, satisfying the (8,128) rule); tile only the N*C axis.
            pl.BlockSpec((block_rows, h, w), lambda i: (i, 0, 0)),
        ],
        out_specs=pl.BlockSpec((block_rows, h, w), lambda i: (i, 0, 0)),
        scratch_shapes=[pltpu.VMEM((block_rows, h + 2, w + 2), jnp.float32)],
        compiler_params=pltpu.CompilerParams(
            dimension_semantics=("parallel",),
        ),
    )(x2)

    # TODO(synk): for W < 128 the output stores are lane-masked (partial vst);
    # a lane-dense layout would need an NCHW->NHWC transpose, which costs an
    # extra HBM pass and is not worth it for this memory-bound op.
    return out2.reshape(n, c, h, w)


def blur_reference(x):
    """Pure-JAX reference matching F.conv2d(x, k, stride=1, padding=1, groups=C)."""
    k = jnp.array([[1.0, 2.0, 1.0], [2.0, 4.0, 2.0], [1.0, 2.0, 1.0]],
                  dtype=jnp.float32) / 16.0
    n, c, h, w = x.shape
    xp = jnp.pad(x.astype(jnp.float32), ((0, 0), (0, 0), (1, 1), (1, 1)))
    out = jnp.zeros((n, c, h, w), jnp.float32)
    for dh in range(3):
        for dw in range(3):
            out = out + k[dh, dw] * xp[:, :, dh:dh + h, dw:dw + w]
    return out.astype(x.dtype)


if __name__ == "__main__":
    key = jax.random.PRNGKey(0)

    # Small NCHW feature map: batch=2, channels=4, spatial=16x16.
    x = jax.random.normal(key, (2, 4, 16, 16), dtype=jnp.float32)

    out = jax.block_until_ready(blur(x))
    ref = jax.block_until_ready(blur_reference(x))

    assert out.shape == x.shape and out.dtype == x.dtype
    assert jnp.allclose(out, ref, atol=1e-5, rtol=1e-5)

    print("KERNEL_OK")
</pallas_src>

<mosaic_0001>
module attributes {stable_mosaic.version = 11 : i64} {
  func.func @_blur_kernel(%arg0: i32, %arg1: memref<8x16x16xf32, #tpu.memory_space<vmem>>, %arg2: memref<8x16x16xf32, #tpu.memory_space<vmem>>, %arg3: memref<8x18x18xf32, #tpu.memory_space<vmem>>) attributes {dimension_semantics = [#tpu.dimension_semantics<parallel>], iteration_bounds = array<i64: 1>, scalar_prefetch = 0 : i64, scratch_operands = 1 : i64, tpu.core_type = #tpu.core_type<tc>, window_params = [{transform_indices = @transform_0, window_bounds = array<i64: 8, 16, 16>}, {transform_indices = @transform_1, window_bounds = array<i64: 8, 16, 16>}]} {
    %cst = arith.constant 0.000000e+00 : f32
    %0 = vector.broadcast %cst : f32 to vector<8x1x18xf32>
    %cst_0 = arith.constant 0.000000e+00 : f32
    %1 = vector.broadcast %cst_0 : f32 to vector<8x18x1xf32>
    %c0 = arith.constant 0 : index
    %c0_1 = arith.constant 0 : index
    %c0_2 = arith.constant 0 : index
    %2 = vector.load %arg3[%c0, %c0_1, %c0_2] : memref<8x18x18xf32, #tpu.memory_space<vmem>>, vector<8x1x18xf32>
    tpu.vector_store %arg3[%c0, %c0_1, %c0_2], %0 {strides = array<i32>} : memref<8x18x18xf32, #tpu.memory_space<vmem>>, vector<8x1x18xf32>,
    %c0_3 = arith.constant 0 : index
    %c17 = arith.constant 17 : index
    %c0_4 = arith.constant 0 : index
    %3 = vector.load %arg3[%c0_3, %c17, %c0_4] : memref<8x18x18xf32, #tpu.memory_space<vmem>>, vector<8x1x18xf32>
    tpu.vector_store %arg3[%c0_3, %c17, %c0_4], %0 {strides = array<i32>} : memref<8x18x18xf32, #tpu.memory_space<vmem>>, vector<8x1x18xf32>,
    %c0_5 = arith.constant 0 : index
    %c0_6 = arith.constant 0 : index
    %c0_7 = arith.constant 0 : index
    %4 = vector.load %arg3[%c0_5, %c0_6, %c0_7] : memref<8x18x18xf32, #tpu.memory_space<vmem>>, vector<8x18x1xf32>
    tpu.vector_store %arg3[%c0_5, %c0_6, %c0_7], %1 {strides = array<i32>} : memref<8x18x18xf32, #tpu.memory_space<vmem>>, vector<8x18x1xf32>,
    %c0_8 = arith.constant 0 : index
    %c0_9 = arith.constant 0 : index
    %c17_10 = arith.constant 17 : index
    %5 = vector.load %arg3[%c0_8, %c0_9, %c17_10] : memref<8x18x18xf32, #tpu.memory_space<vmem>>, vector<8x18x1xf32>
    tpu.vector_store %arg3[%c0_8, %c0_9, %c17_10], %1 {strides = array<i32>} : memref<8x18x18xf32, #tpu.memory_space<vmem>>, vector<8x18x1xf32>,
    %c0_11 = arith.constant 0 : index
    %c0_12 = arith.constant 0 : index
    %c0_13 = arith.constant 0 : index
    %6 = vector.load %arg1[%c0_11, %c0_12, %c0_13] : memref<8x16x16xf32, #tpu.memory_space<vmem>>, vector<8x16x16xf32>
    %c0_14 = arith.constant 0 : index
    %c1 = arith.constant 1 : index
    %c1_15 = arith.constant 1 : index
    %7 = vector.load %arg3[%c0_14, %c1, %c1_15] : memref<8x18x18xf32, #tpu.memory_space<vmem>>, vector<8x16x16xf32>
    tpu.vector_store %arg3[%c0_14, %c1, %c1_15], %6 {strides = array<i32>} : memref<8x18x18xf32, #tpu.memory_space<vmem>>, vector<8x16x16xf32>,
    %c0_16 = arith.constant 0 : index
    %c0_17 = arith.constant 0 : index
    %c0_18 = arith.constant 0 : index
    %8 = vector.load %arg3[%c0_16, %c0_17, %c0_18] : memref<8x18x18xf32, #tpu.memory_space<vmem>>, vector<8x18x18xf32>
    %9 = vector.extract_strided_slice %8 {offsets = [0, 0, 0], sizes = [8, 18, 16], strides = [1, 1, 1]} : vector<8x18x18xf32> to vector<8x18x16xf32>
    %10 = vector.extract_strided_slice %8 {offsets = [0, 0, 1], sizes = [8, 18, 16], strides = [1, 1, 1]} : vector<8x18x18xf32> to vector<8x18x16xf32>
    %cst_19 = arith.constant 2.000000e+00 : f32
    %11 = vector.broadcast %cst_19 : f32 to vector<8x18x16xf32>
    %12 = arith.mulf %11, %10 : vector<8x18x16xf32>
    %13 = arith.addf %9, %12 : vector<8x18x16xf32>
    %14 = vector.extract_strided_slice %8 {offsets = [0, 0, 2], sizes = [8, 18, 16], strides = [1, 1, 1]} : vector<8x18x18xf32> to vector<8x18x16xf32>
    %15 = arith.addf %13, %14 : vector<8x18x16xf32>
    %16 = vector.extract_strided_slice %15 {offsets = [0, 0, 0], sizes = [8, 16, 16], strides = [1, 1, 1]} : vector<8x18x16xf32> to vector<8x16x16xf32>
    %17 = vector.extract_strided_slice %15 {offsets = [0, 1, 0], sizes = [8, 16, 16], strides = [1, 1, 1]} : vector<8x18x16xf32> to vector<8x16x16xf32>
    %cst_20 = arith.constant 2.000000e+00 : f32
    %18 = vector.broadcast %cst_20 : f32 to vector<8x16x16xf32>
    %19 = arith.mulf %18, %17 : vector<8x16x16xf32>
    %20 = arith.addf %16, %19 : vector<8x16x16xf32>
    %21 = vector.extract_strided_slice %15 {offsets = [0, 2, 0], sizes = [8, 16, 16], strides = [1, 1, 1]} : vector<8x18x16xf32> to vector<8x16x16xf32>
    %22 = arith.addf %20, %21 : vector<8x16x16xf32>
    %cst_21 = arith.constant 6.250000e-02 : f32
    %23 = vector.broadcast %cst_21 : f32 to vector<8x16x16xf32>
    %24 = arith.mulf %22, %23 : vector<8x16x16xf32>
    %c0_22 = arith.constant 0 : index
    %c0_23 = arith.constant 0 : index
    %c0_24 = arith.constant 0 : index
    %25 = vector.load %arg2[%c0_22, %c0_23, %c0_24] : memref<8x16x16xf32, #tpu.memory_space<vmem>>, vector<8x16x16xf32>
    tpu.vector_store %arg2[%c0_22, %c0_23, %c0_24], %24 {strides = array<i32>} : memref<8x16x16xf32, #tpu.memory_space<vmem>>, vector<8x16x16xf32>,
    return
  }
  func.func @transform_0(%arg0: i32) -> (i32, i32, i32) {
    %c0_i32 = arith.constant 0 : i32
    %c0_i32_0 = arith.constant 0 : i32
    %c0_i32_1 = arith.constant 0 : i32
    return %arg0, %c0_i32, %c0_i32_0 : i32, i32, i32
  }
  func.func @transform_1(%arg0: i32) -> (i32, i32, i32) {
    %c0_i32 = arith.constant 0 : i32
    %c0_i32_0 = arith.constant 0 : i32
    %c0_i32_1 = arith.constant 0 : i32
    return %arg0, %c0_i32, %c0_i32_0 : i32, i32, i32
  }
}

</mosaic_0001>

<llo_original>
// kernel: tpu_custom_call.1
$region0: #{tpu_custom_call.1}
  #allocation0 [shape = 'u32[]', space=smem, size = 0x4, offset = 0x4, fixed_abs, tag = 'smem constant byte address 0x4 - core index']
  #allocation1 [shape = 'u32[144,128]{1,0:T(1,128)}', space=vmem, size = 0x12000, scoped, tag = 'internal scratch']
  #allocation2 [shape = 'f32[8,18,18]{2,1,0:T(8,128)}', space=vmem, size = 0x18000, scoped, tag = 'scratch operand']
  %s0 = inlined_call_operand.hbm [shape: f32[8,16,16], index: 0, kind: input, shape index: {}]
  %s1 = inlined_call_operand.hbm [shape: f32[8,16,16], index: 1, kind: output, shape index: {}]
  %s2 = sld [smem:[#allocation0]]
  $region18: #{tpu_custom_call.1} parent=0
    _
  %s4 = ssub.s32 1, %s2
  %s5 = scalar_select 0, %s4, %s2
  $region1: #{tpu_custom_call.1} parent=0
    #allocation3 [shape = 'u8[65536]{0}', space=vmem, size = 0x10000, scoped, tag = 'input window, operand 0, single buffered']
    #allocation4 [shape = 's32[1]{0}', space=sflag, size = 0x4, scoped, tag = 'scoped memory for tpu_custom_call.1']
    #allocation5 [shape = 's32[1]{0}', space=sflag, size = 0x4, scoped, tag = 'scoped memory for tpu_custom_call.1']
    #allocation6 [shape = 'u8[65536]{0}', space=vmem, size = 0x10000, scoped, tag = 'output window, operand 0, single buffered']
    %6 = vsyncpa [#allocation4], 0
    %7 = vsyncpa [#allocation5], 0
    // Predicated region
    $region2: #{tpu_custom_call.1} parent=1 // pred_check
      _
    $region3: #{tpu_custom_call.1} parent=1 // pred_check_branch
      %9 = sbr.rel (0) target = $region5
    $region4: #{tpu_custom_call.1} parent=1 // pred_region
      %s11 = ssub.s32 2048, 2048
      %12 = vsyncadd [#allocation4], %s11
      %s13 = sshll.u32 [#allocation3], 4
      %s14 = int_to_ptr.vmem [resolvable:$true] %s13
      %19 = dma.hbm_to_vmem [thread:$0]  %s0, 2048, %s14, [#allocation4], 128, 128, 8
    $region5: #{tpu_custom_call.1} parent=1 // pred_fallthru
      _
    // Predicated region
    $region6: #{tpu_custom_call.1} parent=1 // pred_check
      _
    $region7: #{tpu_custom_call.1} parent=1 // pred_check_branch
      %21 = sbr.rel (0) target = $region9
    $region8: #{tpu_custom_call.1} parent=1 // pred_region
      %22 = dma.done [#allocation4], 2048
    $region9: #{tpu_custom_call.1} parent=1 // pred_fallthru
      _
    %vm23 = vcmask 139264
    %24 = vst.msk [vmem:[#allocation2] sm:$0x1] %vm23, 0.0
    %25 = vst.msk [vmem:[#allocation2 + $0x18] sm:$0x1] %vm23, 0.0
    %26 = vst.msk [vmem:[#allocation2 + $0x30] sm:$0x1] %vm23, 0.0
    %27 = vst.msk [vmem:[#allocation2 + $0x48] sm:$0x1] %vm23, 0.0
    %28 = vst.msk [vmem:[#allocation2 + $0x60] sm:$0x1] %vm23, 0.0
    %29 = vst.msk [vmem:[#allocation2 + $0x78] sm:$0x1] %vm23, 0.0
    %30 = vst.msk [vmem:[#allocation2 + $0x90] sm:$0x1] %vm23, 0.0
    %31 = vst.msk [vmem:[#allocation2 + $0xa8] sm:$0x1] %vm23, 0.0
    %32 = vst.msk [vmem:[#allocation2 + $0x11] sm:$0x1] %vm23, 0.0
    %33 = vst.msk [vmem:[#allocation2 + $0x29] sm:$0x1] %vm23, 0.0
    %34 = vst.msk [vmem:[#allocation2 + $0x41] sm:$0x1] %vm23, 0.0
    %35 = vst.msk [vmem:[#allocation2 + $0x59] sm:$0x1] %vm23, 0.0
    %36 = vst.msk [vmem:[#allocation2 + $0x71] sm:$0x1] %vm23, 0.0
    %37 = vst.msk [vmem:[#allocation2 + $0x89] sm:$0x1] %vm23, 0.0
    %38 = vst.msk [vmem:[#allocation2 + $0xa1] sm:$0x1] %vm23, 0.0
    %39 = vst.msk [vmem:[#allocation2 + $0xb9] sm:$0x1] %vm23, 0.0
    %vm40 = vcmask 7168
    %41 = vst.msk [vmem:[#allocation2] sm:$0xff] %vm40, 0.0
    %42 = vst.msk [vmem:[#allocation2 + $0x8] sm:$0xff] %vm40, 0.0
    %vm43 = vcmask 1024
    %44 = vst.msk [vmem:[#allocation2 + $0x10] sm:$0x3] %vm43, 0.0
    %45 = vst.msk [vmem:[#allocation2 + $0x18] sm:$0xff] %vm40, 0.0
    %46 = vst.msk [vmem:[#allocation2 + $0x20] sm:$0xff] %vm40, 0.0
    %47 = vst.msk [vmem:[#allocation2 + $0x28] sm:$0x3] %vm43, 0.0
    %48 = vst.msk [vmem:[#allocation2 + $0x30] sm:$0xff] %vm40, 0.0
    %49 = vst.msk [vmem:[#allocation2 + $0x38] sm:$0xff] %vm40, 0.0
    %50 = vst.msk [vmem:[#allocation2 + $0x40] sm:$0x3] %vm43, 0.0
    %51 = vst.msk [vmem:[#allocation2 + $0x48] sm:$0xff] %vm40, 0.0
    %52 = vst.msk [vmem:[#allocation2 + $0x50] sm:$0xff] %vm40, 0.0
    %53 = vst.msk [vmem:[#allocation2 + $0x58] sm:$0x3] %vm43, 0.0
    %54 = vst.msk [vmem:[#allocation2 + $0x60] sm:$0xff] %vm40, 0.0
    %55 = vst.msk [vmem:[#allocation2 + $0x68] sm:$0xff] %vm40, 0.0
    %56 = vst.msk [vmem:[#allocation2 + $0x70] sm:$0x3] %vm43, 0.0
    %57 = vst.msk [vmem:[#allocation2 + $0x78] sm:$0xff] %vm40, 0.0
    %58 = vst.msk [vmem:[#allocation2 + $0x80] sm:$0xff] %vm40, 0.0
    %59 = vst.msk [vmem:[#allocation2 + $0x88] sm:$0x3] %vm43, 0.0
    %60 = vst.msk [vmem:[#allocation2 + $0x90] sm:$0xff] %vm40, 0.0
    %61 = vst.msk [vmem:[#allocation2 + $0x98] sm:$0xff] %vm40, 0.0
    %62 = vst.msk [vmem:[#allocation2 + $0xa0] sm:$0x3] %vm43, 0.0
    %63 = vst.msk [vmem:[#allocation2 + $0xa8] sm:$0xff] %vm40, 0.0
    %64 = vst.msk [vmem:[#allocation2 + $0xb0] sm:$0xff] %vm40, 0.0
    %65 = vst.msk [vmem:[#allocation2 + $0xb8] sm:$0x3] %vm43, 0.0
    %vm66 = vcmask 146568
    %67 = vst.msk [vmem:[#allocation2] sm:$0xff] %vm66, 0.0
    %68 = vst.msk [vmem:[#allocation2 + $0x8] sm:$0xff] %vm66, 0.0
    %vm69 = vcmask 140424
    %70 = vst.msk [vmem:[#allocation2 + $0x10] sm:$0x3] %vm69, 0.0
    %71 = vst.msk [vmem:[#allocation2 + $0x18] sm:$0xff] %vm66, 0.0
    %72 = vst.msk [vmem:[#allocation2 + $0x20] sm:$0xff] %vm66, 0.0
    %73 = vst.msk [vmem:[#allocation2 + $0x28] sm:$0x3] %vm69, 0.0
    %74 = vst.msk [vmem:[#allocation2 + $0x30] sm:$0xff] %vm66, 0.0
    %75 = vst.msk [vmem:[#allocation2 + $0x38] sm:$0xff] %vm66, 0.0
    %76 = vst.msk [vmem:[#allocation2 + $0x40] sm:$0x3] %vm69, 0.0
    %77 = vst.msk [vmem:[#allocation2 + $0x48] sm:$0xff] %vm66, 0.0
    %78 = vst.msk [vmem:[#allocation2 + $0x50] sm:$0xff] %vm66, 0.0
    %79 = vst.msk [vmem:[#allocation2 + $0x58] sm:$0x3] %vm69, 0.0
    %80 = vst.msk [vmem:[#allocation2 + $0x60] sm:$0xff] %vm66, 0.0
    %81 = vst.msk [vmem:[#allocation2 + $0x68] sm:$0xff] %vm66, 0.0
    %82 = vst.msk [vmem:[#allocation2 + $0x70] sm:$0x3] %vm69, 0.0
    %83 = vst.msk [vmem:[#allocation2 + $0x78] sm:$0xff] %vm66, 0.0
    %84 = vst.msk [vmem:[#allocation2 + $0x80] sm:$0xff] %vm66, 0.0
    %85 = vst.msk [vmem:[#allocation2 + $0x88] sm:$0x3] %vm69, 0.0
    %86 = vst.msk [vmem:[#allocation2 + $0x90] sm:$0xff] %vm66, 0.0
    %87 = vst.msk [vmem:[#allocation2 + $0x98] sm:$0xff] %vm66, 0.0
    %88 = vst.msk [vmem:[#allocation2 + $0xa0] sm:$0x3] %vm69, 0.0
    %89 = vst.msk [vmem:[#allocation2 + $0xa8] sm:$0xff] %vm66, 0.0
    %90 = vst.msk [vmem:[#allocation2 + $0xb0] sm:$0xff] %vm66, 0.0
    %91 = vst.msk [vmem:[#allocation2 + $0xb8] sm:$0x3] %vm69, 0.0
    %v92 = vld [vmem:[#allocation3] sm:$0xff]
    %v93 = vld [vmem:[#allocation3 + $0x8] sm:$0xff]
    %v94 = vld [vmem:[#allocation3 + $0x10] sm:$0xff]
    %v95 = vld [vmem:[#allocation3 + $0x18] sm:$0xff]
    %v96 = vld [vmem:[#allocation3 + $0x20] sm:$0xff]
    %v97 = vld [vmem:[#allocation3 + $0x28] sm:$0xff]
    %v98 = vld [vmem:[#allocation3 + $0x30] sm:$0xff]
    %v99 = vld [vmem:[#allocation3 + $0x38] sm:$0xff]
    %v100 = vld [vmem:[#allocation3 + $0x40] sm:$0xff]
    %v101 = vld [vmem:[#allocation3 + $0x48] sm:$0xff]
    %v102 = vld [vmem:[#allocation3 + $0x50] sm:$0xff]
    %v103 = vld [vmem:[#allocation3 + $0x58] sm:$0xff]
    %v104 = vld [vmem:[#allocation3 + $0x60] sm:$0xff]
    %v105 = vld [vmem:[#allocation3 + $0x68] sm:$0xff]
    %v106 = vld [vmem:[#allocation3 + $0x70] sm:$0xff]
    %v107 = vld [vmem:[#allocation3 + $0x78] sm:$0xff]
    %124 = vrot.lane.b32.xlu0 %v92, 1
    %v125 = vpop.permute.xlu0 %124
    %126 = vrot.lane.b32.xlu0 %v93, 1
    %v127 = vpop.permute.xlu0 %126
    %128 = vrot.lane.b32.xlu0 %v94, 1
    %v129 = vpop.permute.xlu0 %128
    %130 = vrot.lane.b32.xlu0 %v95, 1
    %v131 = vpop.permute.xlu0 %130
    %132 = vrot.lane.b32.xlu0 %v96, 1
    %v133 = vpop.permute.xlu0 %132
    %134 = vrot.lane.b32.xlu0 %v97, 1
    %v135 = vpop.permute.xlu0 %134
    %136 = vrot.lane.b32.xlu0 %v98, 1
    %v137 = vpop.permute.xlu0 %136
    %138 = vrot.lane.b32.xlu0 %v99, 1
    %v139 = vpop.permute.xlu0 %138
    %140 = vrot.lane.b32.xlu0 %v100, 1
    %v141 = vpop.permute.xlu0 %140
    %142 = vrot.lane.b32.xlu0 %v101, 1
    %v143 = vpop.permute.xlu0 %142
    %144 = vrot.lane.b32.xlu0 %v102, 1
    %v145 = vpop.permute.xlu0 %144
    %146 = vrot.lane.b32.xlu0 %v103, 1
    %v147 = vpop.permute.xlu0 %146
    %148 = vrot.lane.b32.xlu0 %v104, 1
    %v149 = vpop.permute.xlu0 %148
    %150 = vrot.lane.b32.xlu0 %v105, 1
    %v151 = vpop.permute.xlu0 %150
    %152 = vrot.lane.b32.xlu0 %v106, 1
    %v153 = vpop.permute.xlu0 %152
    %154 = vrot.lane.b32.xlu0 %v107, 1
    %v155 = vpop.permute.xlu0 %154
    %vm172 = vcmask 138248
    %173 = vst.msk [vmem:[#allocation2 + $0x1] sm:$0xff] %vm172, %v125
    %174 = vst.msk [vmem:[#allocation2 + $0x9] sm:$0xff] %vm172, %v127
    %175 = vst.msk [vmem:[#allocation2 + $0x19] sm:$0xff] %vm172, %v129
    %176 = vst.msk [vmem:[#allocation2 + $0x21] sm:$0xff] %vm172, %v131
    %177 = vst.msk [vmem:[#allocation2 + $0x31] sm:$0xff] %vm172, %v133
    %178 = vst.msk [vmem:[#allocation2 + $0x39] sm:$0xff] %vm172, %v135
    %179 = vst.msk [vmem:[#allocation2 + $0x49] sm:$0xff] %vm172, %v137
    %180 = vst.msk [vmem:[#allocation2 + $0x51] sm:$0xff] %vm172, %v139
    %181 = vst.msk [vmem:[#allocation2 + $0x61] sm:$0xff] %vm172, %v141
    %182 = vst.msk [vmem:[#allocation2 + $0x69] sm:$0xff] %vm172, %v143
    %183 = vst.msk [vmem:[#allocation2 + $0x79] sm:$0xff] %vm172, %v145
    %184 = vst.msk [vmem:[#allocation2 + $0x81] sm:$0xff] %vm172, %v147
    %185 = vst.msk [vmem:[#allocation2 + $0x91] sm:$0xff] %vm172, %v149
    %186 = vst.msk [vmem:[#allocation2 + $0x99] sm:$0xff] %vm172, %v151
    %187 = vst.msk [vmem:[#allocation2 + $0xa9] sm:$0xff] %vm172, %v153
    %188 = vst.msk [vmem:[#allocation2 + $0xb1] sm:$0xff] %vm172, %v155
    %v189 = vld [vmem:[#allocation2] sm:$0xff]
    %v190 = vld [vmem:[#allocation2 + $0x8] sm:$0xff]
    %v191 = vld [vmem:[#allocation2 + $0x10] sm:$0x3]
    %v192 = vld [vmem:[#allocation2 + $0x18] sm:$0xff]
    %v193 = vld [vmem:[#allocation2 + $0x20] sm:$0xff]
    %v194 = vld [vmem:[#allocation2 + $0x28] sm:$0x3]
    %v195 = vld [vmem:[#allocation2 + $0x30] sm:$0xff]
    %v196 = vld [vmem:[#allocation2 + $0x38] sm:$0xff]
    %v197 = vld [vmem:[#allocation2 + $0x40] sm:$0x3]
    %v198 = vld [vmem:[#allocation2 + $0x48] sm:$0xff]
    %v199 = vld [vmem:[#allocation2 + $0x50] sm:$0xff]
    %v200 = vld [vmem:[#allocation2 + $0x58] sm:$0x3]
    %v201 = vld [vmem:[#allocation2 + $0x60] sm:$0xff]
    %v202 = vld [vmem:[#allocation2 + $0x68] sm:$0xff]
    %v203 = vld [vmem:[#allocation2 + $0x70] sm:$0x3]
    %v204 = vld [vmem:[#allocation2 + $0x78] sm:$0xff]
    %v205 = vld [vmem:[#allocation2 + $0x80] sm:$0xff]
    %v206 = vld [vmem:[#allocation2 + $0x88] sm:$0x3]
    %v207 = vld [vmem:[#allocation2 + $0x90] sm:$0xff]
    %v208 = vld [vmem:[#allocation2 + $0x98] sm:$0xff]
    %v209 = vld [vmem:[#allocation2 + $0xa0] sm:$0x3]
    %v210 = vld [vmem:[#allocation2 + $0xa8] sm:$0xff]
    %v211 = vld [vmem:[#allocation2 + $0xb0] sm:$0xff]
    %v212 = vld [vmem:[#allocation2 + $0xb8] sm:$0x3]
    %v213 = vmul.f32 %v189, 2.0
    %v214 = vmul.f32 %v190, 2.0
    %v215 = vmul.f32 %v191, 2.0
    %v216 = vmul.f32 %v192, 2.0
    %v217 = vmul.f32 %v193, 2.0
    %v218 = vmul.f32 %v194, 2.0
    %v219 = vmul.f32 %v195, 2.0
    %v220 = vmul.f32 %v196, 2.0
    %v221 = vmul.f32 %v197, 2.0
    %v222 = vmul.f32 %v198, 2.0
    %v223 = vmul.f32 %v199, 2.0
    %v224 = vmul.f32 %v200, 2.0
    %v225 = vmul.f32 %v201, 2.0
    %v226 = vmul.f32 %v202, 2.0
    %v227 = vmul.f32 %v203, 2.0
    %v228 = vmul.f32 %v204, 2.0
    %v229 = vmul.f32 %v205, 2.0
    %v230 = vmul.f32 %v206, 2.0
    %v231 = vmul.f32 %v207, 2.0
    %v232 = vmul.f32 %v208, 2.0
    %v233 = vmul.f32 %v209, 2.0
    %v234 = vmul.f32 %v210, 2.0
    %v235 = vmul.f32 %v211, 2.0
    %v236 = vmul.f32 %v212, 2.0
    %261 = vrot.lane.b32.xlu0 %v213, 127
    %v262 = vpop.permute.xlu0 %261
    %263 = vrot.lane.b32.xlu0 %v214, 127
    %v264 = vpop.permute.xlu0 %263
    %265 = vrot.lane.b32.xlu0 %v215, 127
    %v266 = vpop.permute.xlu0 %265
    %267 = vrot.lane.b32.xlu0 %v216, 127
    %v268 = vpop.permute.xlu0 %267
    %269 = vrot.lane.b32.xlu0 %v217, 127
    %v270 = vpop.permute.xlu0 %269
    %271 = vrot.lane.b32.xlu0 %v218, 127
    %v272 = vpop.permute.xlu0 %271
    %273 = vrot.lane.b32.xlu0 %v219, 127
    %v274 = vpop.permute.xlu0 %273
    %275 = vrot.lane.b32.xlu0 %v220, 127
    %v276 = vpop.permute.xlu0 %275
    %277 = vrot.lane.b32.xlu0 %v221, 127
    %v278 = vpop.permute.xlu0 %277
    %279 = vrot.lane.b32.xlu0 %v222, 127
    %v280 = vpop.permute.xlu0 %279
    %281 = vrot.lane.b32.xlu0 %v223, 127
    %v282 = vpop.permute.xlu0 %281
    %283 = vrot.lane.b32.xlu0 %v224, 127
    %v284 = vpop.permute.xlu0 %283
    %285 = vrot.lane.b32.xlu0 %v225, 127
    %v286 = vpop.permute.xlu0 %285
    %287 = vrot.lane.b32.xlu0 %v226, 127
    %v288 = vpop.permute.xlu0 %287
    %289 = vrot.lane.b32.xlu0 %v227, 127
    %v290 = vpop.permute.xlu0 %289
    %291 = vrot.lane.b32.xlu0 %v228, 127
    %v292 = vpop.permute.xlu0 %291
    %293 = vrot.lane.b32.xlu0 %v229, 127
    %v294 = vpop.permute.xlu0 %293
    %295 = vrot.lane.b32.xlu0 %v230, 127
    %v296 = vpop.permute.xlu0 %295
    %297 = vrot.lane.b32.xlu0 %v231, 127
    %v298 = vpop.permute.xlu0 %297
    %299 = vrot.lane.b32.xlu0 %v232, 127
    %v300 = vpop.permute.xlu0 %299
    %301 = vrot.lane.b32.xlu0 %v233, 127
    %v302 = vpop.permute.xlu0 %301
    %303 = vrot.lane.b32.xlu0 %v234, 127
    %v304 = vpop.permute.xlu0 %303
    %305 = vrot.lane.b32.xlu0 %v235, 127
    %v306 = vpop.permute.xlu0 %305
    %307 = vrot.lane.b32.xlu0 %v236, 127
    %v308 = vpop.permute.xlu0 %307
    %v333 = vadd.f32 %v189, %v262
    %v334 = vadd.f32 %v190, %v264
    %v335 = vadd.f32 %v191, %v266
    %v336 = vadd.f32 %v192, %v268
    %v337 = vadd.f32 %v193, %v270
    %v338 = vadd.f32 %v194, %v272
    %v339 = vadd.f32 %v195, %v274
    %v340 = vadd.f32 %v196, %v276
    %v341 = vadd.f32 %v197, %v278
    %v342 = vadd.f32 %v198, %v280
    %v343 = vadd.f32 %v199, %v282
    %v344 = vadd.f32 %v200, %v284
    %v345 = vadd.f32 %v201, %v286
    %v346 = vadd.f32 %v202, %v288
    %v347 = vadd.f32 %v203, %v290
    %v348 = vadd.f32 %v204, %v292
    %v349 = vadd.f32 %v205, %v294
    %v350 = vadd.f32 %v206, %v296
    %v351 = vadd.f32 %v207, %v298
    %v352 = vadd.f32 %v208, %v300
    %v353 = vadd.f32 %v209, %v302
    %v354 = vadd.f32 %v210, %v304
    %v355 = vadd.f32 %v211, %v306
    %v356 = vadd.f32 %v212, %v308
    %381 = vrot.lane.b32.xlu0 %v189, 126
    %v382 = vpop.permute.xlu0 %381
    %383 = vrot.lane.b32.xlu0 %v190, 126
    %v384 = vpop.permute.xlu0 %383
    %385 = vrot.lane.b32.xlu0 %v191, 126
    %v386 = vpop.permute.xlu0 %385
    %387 = vrot.lane.b32.xlu0 %v192, 126
    %v388 = vpop.permute.xlu0 %387
    %389 = vrot.lane.b32.xlu0 %v193, 126
    %v390 = vpop.permute.xlu0 %389
    %391 = vrot.lane.b32.xlu0 %v194, 126
    %v392 = vpop.permute.xlu0 %391
    %393 = vrot.lane.b32.xlu0 %v195, 126
    %v394 = vpop.permute.xlu0 %393
    %395 = vrot.lane.b32.xlu0 %v196, 126
    %v396 = vpop.permute.xlu0 %395
    %397 = vrot.lane.b32.xlu0 %v197, 126
    %v398 = vpop.permute.xlu0 %397
    %399 = vrot.lane.b32.xlu0 %v198, 126
    %v400 = vpop.permute.xlu0 %399
    %401 = vrot.lane.b32.xlu0 %v199, 126
    %v402 = vpop.permute.xlu0 %401
    %403 = vrot.lane.b32.xlu0 %v200, 126
    %v404 = vpop.permute.xlu0 %403
    %405 = vrot.lane.b32.xlu0 %v201, 126
    %v406 = vpop.permute.xlu0 %405
    %407 = vrot.lane.b32.xlu0 %v202, 126
    %v408 = vpop.permute.xlu0 %407
    %409 = vrot.lane.b32.xlu0 %v203, 126
    %v410 = vpop.permute.xlu0 %409
    %411 = vrot.lane.b32.xlu0 %v204, 126
    %v412 = vpop.permute.xlu0 %411
    %413 = vrot.lane.b32.xlu0 %v205, 126
    %v414 = vpop.permute.xlu0 %413
    %415 = vrot.lane.b32.xlu0 %v206, 126
    %v416 = vpop.permute.xlu0 %415
    %417 = vrot.lane.b32.xlu0 %v207, 126
    %v418 = vpop.permute.xlu0 %417
    %419 = vrot.lane.b32.xlu0 %v208, 126
    %v420 = vpop.permute.xlu0 %419
    %421 = vrot.lane.b32.xlu0 %v209, 126
    %v422 = vpop.permute.xlu0 %421
    %423 = vrot.lane.b32.xlu0 %v210, 126
    %v424 = vpop.permute.xlu0 %423
    %425 = vrot.lane.b32.xlu0 %v211, 126
    %v426 = vpop.permute.xlu0 %425
    %427 = vrot.lane.b32.xlu0 %v212, 126
    %v428 = vpop.permute.xlu0 %427
    %v453 = vadd.f32 %v333, %v382
    %v454 = vadd.f32 %v334, %v384
    %v455 = vadd.f32 %v335, %v386
    %v456 = vadd.f32 %v336, %v388
    %v457 = vadd.f32 %v337, %v390
    %v458 = vadd.f32 %v338, %v392
    %v459 = vadd.f32 %v339, %v394
    %v460 = vadd.f32 %v340, %v396
    %v461 = vadd.f32 %v341, %v398
    %v462 = vadd.f32 %v342, %v400
    %v463 = vadd.f32 %v343, %v402
    %v464 = vadd.f32 %v344, %v404
    %v465 = vadd.f32 %v345, %v406
    %v466 = vadd.f32 %v346, %v408
    %v467 = vadd.f32 %v347, %v410
    %v468 = vadd.f32 %v348, %v412
    %v469 = vadd.f32 %v349, %v414
    %v470 = vadd.f32 %v350, %v416
    %v471 = vadd.f32 %v351, %v418
    %v472 = vadd.f32 %v352, %v420
    %v473 = vadd.f32 %v353, %v422
    %v474 = vadd.f32 %v354, %v424
    %v475 = vadd.f32 %v355, %v426
    %v476 = vadd.f32 %v356, %v428
    %v477 = vmul.f32 %v453, 2.0
    %v478 = vmul.f32 %v454, 2.0
    %v479 = vmul.f32 %v455, 2.0
    %v480 = vmul.f32 %v456, 2.0
    %v481 = vmul.f32 %v457, 2.0
    %v482 = vmul.f32 %v458, 2.0
    %v483 = vmul.f32 %v459, 2.0
    %v484 = vmul.f32 %v460, 2.0
    %v485 = vmul.f32 %v461, 2.0
    %v486 = vmul.f32 %v462, 2.0
    %v487 = vmul.f32 %v463, 2.0
    %v488 = vmul.f32 %v464, 2.0
    %v489 = vmul.f32 %v465, 2.0
    %v490 = vmul.f32 %v466, 2.0
    %v491 = vmul.f32 %v467, 2.0
    %v492 = vmul.f32 %v468, 2.0
    %v493 = vmul.f32 %v469, 2.0
    %v494 = vmul.f32 %v470, 2.0
    %v495 = vmul.f32 %v471, 2.0
    %v496 = vmul.f32 %v472, 2.0
    %v497 = vmul.f32 %v473, 2.0
    %v498 = vmul.f32 %v474, 2.0
    %v499 = vmul.f32 %v475, 2.0
    %v500 = vmul.f32 %v476, 2.0
    %vm525 = vcmask 1046528
    %v526 = vrot.slane %v477, 1
    %v527 = vrot.slane %v478, 1
    %v528 = vsel %vm525, %v526, %v527
    %v529 = vrot.slane %v479, 1
    %v530 = vsel %vm525, %v527, %v529
    %v531 = vrot.slane %v480, 1
    %v532 = vrot.slane %v481, 1
    %v533 = vsel %vm525, %v531, %v532
    %v534 = vrot.slane %v482, 1
    %v535 = vsel %vm525, %v532, %v534
    %v536 = vrot.slane %v483, 1
    %v537 = vrot.slane %v484, 1
    %v538 = vsel %vm525, %v536, %v537
    %v539 = vrot.slane %v485, 1
    %v540 = vsel %vm525, %v537, %v539
    %v541 = vrot.slane %v486, 1
    %v542 = vrot.slane %v487, 1
    %v543 = vsel %vm525, %v541, %v542
    %v544 = vrot.slane %v488, 1
    %v545 = vsel %vm525, %v542, %v544
    %v546 = vrot.slane %v489, 1
    %v547 = vrot.slane %v490, 1
    %v548 = vsel %vm525, %v546, %v547
    %v549 = vrot.slane %v491, 1
    %v550 = vsel %vm525, %v547, %v549
    %v551 = vrot.slane %v492, 1
    %v552 = vrot.slane %v493, 1
    %v553 = vsel %vm525, %v551, %v552
    %v554 = vrot.slane %v494, 1
    %v555 = vsel %vm525, %v552, %v554
    %v556 = vrot.slane %v495, 1
    %v557 = vrot.slane %v496, 1
    %v558 = vsel %vm525, %v556, %v557
    %v559 = vrot.slane %v497, 1
    %v560 = vsel %vm525, %v557, %v559
    %v561 = vrot.slane %v498, 1
    %v562 = vrot.slane %v499, 1
    %v563 = vsel %vm525, %v561, %v562
    %v564 = vrot.slane %v500, 1
    %v565 = vsel %vm525, %v562, %v564
    %v582 = vadd.f32 %v453, %v528
    %v583 = vadd.f32 %v454, %v530
    %v584 = vadd.f32 %v456, %v533
    %v585 = vadd.f32 %v457, %v535
    %v586 = vadd.f32 %v459, %v538
    %v587 = vadd.f32 %v460, %v540
    %v588 = vadd.f32 %v462, %v543
    %v589 = vadd.f32 %v463, %v545
    %v590 = vadd.f32 %v465, %v548
    %v591 = vadd.f32 %v466, %v550
    %v592 = vadd.f32 %v468, %v553
    %v593 = vadd.f32 %v469, %v555
    %v594 = vadd.f32 %v471, %v558
    %v595 = vadd.f32 %v472, %v560
    %v596 = vadd.f32 %v474, %v563
    %v597 = vadd.f32 %v475, %v565
    %vm622 = vcmask 1045504
    %v623 = vrot.slane %v453, 2
    %v624 = vrot.slane %v454, 2
    %v625 = vsel %vm622, %v623, %v624
    %v626 = vrot.slane %v455, 2
    %v627 = vsel %vm622, %v624, %v626
    %v628 = vrot.slane %v456, 2
    %v629 = vrot.slane %v457, 2
    %v630 = vsel %vm622, %v628, %v629
    %v631 = vrot.slane %v458, 2
    %v632 = vsel %vm622, %v629, %v631
    %v633 = vrot.slane %v459, 2
    %v634 = vrot.slane %v460, 2
    %v635 = vsel %vm622, %v633, %v634
    %v636 = vrot.slane %v461, 2
    %v637 = vsel %vm622, %v634, %v636
    %v638 = vrot.slane %v462, 2
    %v639 = vrot.slane %v463, 2
    %v640 = vsel %vm622, %v638, %v639
    %v641 = vrot.slane %v464, 2
    %v642 = vsel %vm622, %v639, %v641
    %v643 = vrot.slane %v465, 2
    %v644 = vrot.slane %v466, 2
    %v645 = vsel %vm622, %v643, %v644
    %v646 = vrot.slane %v467, 2
    %v647 = vsel %vm622, %v644, %v646
    %v648 = vrot.slane %v468, 2
    %v649 = vrot.slane %v469, 2
    %v650 = vsel %vm622, %v648, %v649
    %v651 = vrot.slane %v470, 2
    %v652 = vsel %vm622, %v649, %v651
    %v653 = vrot.slane %v471, 2
    %v654 = vrot.slane %v472, 2
    %v655 = vsel %vm622, %v653, %v654
    %v656 = vrot.slane %v473, 2
    %v657 = vsel %vm622, %v654, %v656
    %v658 = vrot.slane %v474, 2
    %v659 = vrot.slane %v475, 2
    %v660 = vsel %vm622, %v658, %v659
    %v661 = vrot.slane %v476, 2
    %v662 = vsel %vm622, %v659, %v661
    %v679 = vadd.f32 %v582, %v625
    %v680 = vadd.f32 %v583, %v627
    %v681 = vadd.f32 %v584, %v630
    %v682 = vadd.f32 %v585, %v632
    %v683 = vadd.f32 %v586, %v635
    %v684 = vadd.f32 %v587, %v637
    %v685 = vadd.f32 %v588, %v640
    %v686 = vadd.f32 %v589, %v642
    %v687 = vadd.f32 %v590, %v645
    %v688 = vadd.f32 %v591, %v647
    %v689 = vadd.f32 %v592, %v650
    %v690 = vadd.f32 %v593, %v652
    %v691 = vadd.f32 %v594, %v655
    %v692 = vadd.f32 %v595, %v657
    %v693 = vadd.f32 %v596, %v660
    %v694 = vadd.f32 %v597, %v662
    %v695 = vmul.f32 %v679, 0.0625
    %v696 = vmul.f32 %v680, 0.0625
    %v697 = vmul.f32 %v681, 0.0625
    %v698 = vmul.f32 %v682, 0.0625
    %v699 = vmul.f32 %v683, 0.0625
    %v700 = vmul.f32 %v684, 0.0625
    %v701 = vmul.f32 %v685, 0.0625
    %v702 = vmul.f32 %v686, 0.0625
    %v703 = vmul.f32 %v687, 0.0625
    %v704 = vmul.f32 %v688, 0.0625
    %v705 = vmul.f32 %v689, 0.0625
    %v706 = vmul.f32 %v690, 0.0625
    %v707 = vmul.f32 %v691, 0.0625
    %v708 = vmul.f32 %v692, 0.0625
    %v709 = vmul.f32 %v693, 0.0625
    %v710 = vmul.f32 %v694, 0.0625
    %vm711 = vcmask 130048
    %712 = vst.msk [vmem:[#allocation6] sm:$0xff] %vm711, %v695
    %713 = vst.msk [vmem:[#allocation6 + $0x8] sm:$0xff] %vm711, %v696
    %714 = vst.msk [vmem:[#allocation6 + $0x10] sm:$0xff] %vm711, %v697
    %715 = vst.msk [vmem:[#allocation6 + $0x18] sm:$0xff] %vm711, %v698
    %716 = vst.msk [vmem:[#allocation6 + $0x20] sm:$0xff] %vm711, %v699
    %717 = vst.msk [vmem:[#allocation6 + $0x28] sm:$0xff] %vm711, %v700
    %718 = vst.msk [vmem:[#allocation6 + $0x30] sm:$0xff] %vm711, %v701
    %719 = vst.msk [vmem:[#allocation6 + $0x38] sm:$0xff] %vm711, %v702
    %720 = vst.msk [vmem:[#allocation6 + $0x40] sm:$0xff] %vm711, %v703
    %721 = vst.msk [vmem:[#allocation6 + $0x48] sm:$0xff] %vm711, %v704
    %722 = vst.msk [vmem:[#allocation6 + $0x50] sm:$0xff] %vm711, %v705
    %723 = vst.msk [vmem:[#allocation6 + $0x58] sm:$0xff] %vm711, %v706
    %724 = vst.msk [vmem:[#allocation6 + $0x60] sm:$0xff] %vm711, %v707
    %725 = vst.msk [vmem:[#allocation6 + $0x68] sm:$0xff] %vm711, %v708
    %726 = vst.msk [vmem:[#allocation6 + $0x70] sm:$0xff] %vm711, %v709
    %727 = vst.msk [vmem:[#allocation6 + $0x78] sm:$0xff] %vm711, %v710
    // Predicated region
    $region10: #{tpu_custom_call.1} parent=1 // pred_check
      _
    $region11: #{tpu_custom_call.1} parent=1 // pred_check_branch
      %729 = sbr.rel (0) target = $region13
    $region12: #{tpu_custom_call.1} parent=1 // pred_region
      %s731 = ssub.s32 2048, 2048
      %732 = vsyncadd [#allocation5], %s731
      %s733 = sshll.u32 [#allocation6], 4
      %s734 = int_to_ptr.vmem [resolvable:$true] %s733
      %739 = dma.vmem_to_hbm [thread:$0]  %s734, 2048, %s1, [#allocation5], 128, 128, 8
    $region13: #{tpu_custom_call.1} parent=1 // pred_fallthru
      _
    // Predicated region
    $region14: #{tpu_custom_call.1} parent=1 // pred_check
      _
    $region15: #{tpu_custom_call.1} parent=1 // pred_check_branch
      %741 = sbr.rel (0) target = $region17
    $region16: #{tpu_custom_call.1} parent=1 // pred_region
      %742 = dma.done [#allocation5], 2048
    $region17: #{tpu_custom_call.1} parent=1 // pred_fallthru
      _
    %743 = vsyncpa [#allocation4], 1
    %744 = vsyncpa [#allocation5], 1

</llo_original>
